<compile_context>
chip_gen: v5e
topology: v5e:2x2
jax: 0.10.0
libtpu: 0.0.40
codegen_flags: <defaults>
</compile_context>

<pallas_src>
import math
import functools

import jax
import jax.numpy as jnp
from jax.experimental import pallas as pl
from jax.experimental.pallas import tpu as pltpu

_LANE = 128


def _round_up(x, m):
    return ((x + m - 1) // m) * m


# ----------------------------------------------------------------------------
# Activation (applied in f32 inside the kernel epilogue)
# ----------------------------------------------------------------------------
def _apply_act(x, act_name):
    if act_name == "ReLU":
        return jnp.maximum(x, 0.0)
    elif act_name == "erf":
        return jax.lax.erf(x)
    elif act_name == "GELU":
        # torch.nn.GELU default = exact erf formulation
        return 0.5 * x * (1.0 + jax.lax.erf(x / jnp.sqrt(2.0).astype(x.dtype)))
    elif act_name == "Tanh":
        return jnp.tanh(x)
    elif act_name in ("Linear", None):
        return x
    else:
        raise RuntimeError("unsupported activation: %s" % act_name)


# ----------------------------------------------------------------------------
# Fused kernel: the whole layer chain for one batch tile.
#   refs = (wt_0, b_0, wt_1, b_1, ..., wt_{L-1}, b_{L-1}, o_ref)
# The static Python loop is unrolled at trace time; intermediate activations
# live in vregs / compiler-managed VMEM (widths are at most (TILE_N, H_pad)).
# ----------------------------------------------------------------------------
def _fcc_fused_kernel(x_ref, *refs, n_layers, act_name):
    o_ref = refs[-1]
    w_refs = refs[:-1]

    y = x_ref[...].astype(jnp.float32)
    for l in range(n_layers):
        wt_ref = w_refs[2 * l]
        b_ref = w_refs[2 * l + 1]
        if l > 0:
            y = _apply_act(y, act_name)
        # Feed the matmul in the weight dtype (bf16-native MXU on v6e/v7x),
        # accumulate in f32, keep bias/activation epilogue in f32.
        y = jnp.dot(y.astype(wt_ref.dtype), wt_ref[...],
                    preferred_element_type=jnp.float32)
        y = y + b_ref[...].astype(jnp.float32)      # (1, out) broadcasts

    o_ref[...] = y.astype(o_ref.dtype)


# ----------------------------------------------------------------------------
# Parameter init (mirrors Standard_Linear.reset_parameters) + one-time prep.
# ----------------------------------------------------------------------------
def init_fcc_standard_params(key, in_size, h_size, out_size, n_hidden,
                             sigma_w, sigma_b):
    """W ~ N(0, std_weights / sqrt(fan_in)), b ~ N(0, std_bias). PyTorch layout."""
    params = []

    def make_layer(k, fan_in, fan_out, std_w, std_b):
        kw, kb = jax.random.split(k)
        w = jax.random.normal(kw, (fan_out, fan_in), jnp.float32) * (
            std_w / math.sqrt(fan_in))
        b = jax.random.normal(kb, (fan_out,), jnp.float32) * std_b
        return w, b

    keys = jax.random.split(key, n_hidden + 2)
    params.append(make_layer(keys[0], in_size, h_size, 1.0, sigma_b))
    for i in range(n_hidden):
        params.append(make_layer(keys[1 + i], h_size, h_size, sigma_w, sigma_b))
    params.append(make_layer(keys[-1], h_size, out_size, sigma_w, sigma_b))
    return params


def prepare_fused_params(params, weight_dtype=jnp.float32):
    """One-time prep: transpose to (in, out), pad feature dims to 128, cast.

    Returns (prepped, dims) where prepped = [(wt (in_pad,out_pad), b (1,out_pad))]
    and dims = [(in, out, in_pad, out_pad)] per layer.
    Zero padding is exact for ReLU/erf/GELU/Tanh/Linear since act(0) == 0.
    """
    prepped, dims = [], []
    for (w, b) in params:
        out_f, in_f = w.shape
        in_pad = _round_up(in_f, _LANE)
        out_pad = _round_up(out_f, _LANE)
        wt = jnp.zeros((in_pad, out_pad), weight_dtype)
        wt = wt.at[:in_f, :out_f].set(jnp.transpose(w).astype(weight_dtype))
        b2 = jnp.zeros((1, out_pad), jnp.float32).at[:, :out_f].set(
            b.astype(jnp.float32))
        prepped.append((wt, b2))
        dims.append((in_f, out_f, in_pad, out_pad))
    return prepped, dims


# ----------------------------------------------------------------------------
# Forward: single fused pallas_call, grid over batch tiles only.
# ----------------------------------------------------------------------------
def fcc_standard_forward(x, prepped, dims, act_name, *, tile_n=256):
    N = x.shape[0]
    xf = x.reshape(N, -1).astype(jnp.float32)          # flatten()
    K = xf.shape[1]
    assert K == dims[0][0], (K, dims[0][0])
    K_pad = dims[0][2]
    out_size = dims[-1][1]
    OUT_pad = dims[-1][3]
    n_layers = len(prepped)

    # Batch tiling: pad N to a multiple of 8, then to a multiple of TILE_N.
    N_pad = _round_up(max(N, 8), 8)
    TILE_N = min(tile_n, N_pad)
    N_pad = _round_up(N_pad, TILE_N)

    # Lane-dense, zero-padded input slab (padded rows/cols contribute 0).
    x_p = jnp.zeros((N_pad, K_pad), jnp.float32).at[:N, :K].set(xf)

    # BlockSpecs: x/out tiled over batch; weights/biases full + constant
    # index_map -> resident in VMEM across all grid steps.
    in_specs = [pl.BlockSpec((TILE_N, K_pad), lambda i: (i, 0))]
    args = [x_p]
    for (wt, b2) in prepped:
        in_specs.append(pl.BlockSpec(wt.shape, lambda i: (0, 0)))
        in_specs.append(pl.BlockSpec(b2.shape, lambda i: (0, 0)))
        args.append(wt)
        args.append(b2)
    out_spec = pl.BlockSpec((TILE_N, OUT_pad), lambda i: (i, 0))

    # VMEM budget: resident weights + double-buffered x/out tiles + two
    # (TILE_N, width) f32 intermediate activation slabs, with headroom.
    weight_bytes = sum(int(wt.size) * wt.dtype.itemsize +
                       int(b2.size) * b2.dtype.itemsize for wt, b2 in prepped)
    max_width = max([K_pad] + [d[3] for d in dims])
    act_bytes = 2 * TILE_N * max_width * 4
    io_bytes = 2 * TILE_N * K_pad * 4 + 2 * TILE_N * OUT_pad * 4
    vmem_limit = int(min(64 * (1 << 20),
                         max(4 * (1 << 20),
                             int(1.5 * (weight_bytes + act_bytes + io_bytes))
                             + (1 << 20))))

    flops = 2 * N_pad * sum(d[2] * d[3] for d in dims)
    transcendentals = (N_pad * max_width * (n_layers - 1)
                       if act_name in ("erf", "GELU", "Tanh") else 0)
    bytes_accessed = (int(x_p.size) * 4 + weight_bytes
                      + N_pad * OUT_pad * 4)
    cost = pl.CostEstimate(flops=flops, transcendentals=transcendentals,
                           bytes_accessed=bytes_accessed)

    kernel = functools.partial(_fcc_fused_kernel, n_layers=n_layers,
                               act_name=act_name)
    out = pl.pallas_call(
        kernel,
        out_shape=jax.ShapeDtypeStruct((N_pad, OUT_pad), jnp.float32),
        grid=(N_pad // TILE_N,),
        in_specs=in_specs,
        out_specs=out_spec,
        compiler_params=pltpu.CompilerParams(
            dimension_semantics=("parallel",),
            vmem_limit_bytes=vmem_limit),
        cost_estimate=cost,
    )(*args)

    return out[:N, :out_size]


# ----------------------------------------------------------------------------
# Reference (pure JAX) for sanity checking
# ----------------------------------------------------------------------------
def fcc_standard_forward_ref(x, params, act_name):
    N = x.shape[0]
    y = x.reshape(N, -1)
    w0, b0 = params[0]
    y = y @ w0.T + b0
    for (w, b) in params[1:]:
        y = _apply_act(y, act_name)
        y = y @ w.T + b
    return y


if __name__ == "__main__":
    # small config consistent with the module: flatten(2,4,4,4) -> in_size=64
    in_shape = (2, 4, 4, 4)
    in_size = 4 * 4 * 4
    h_size = 128
    out_size = 32
    n_hidden = 2
    sigma_w = 1.5
    sigma_b = 0.1
    act_name = "erf"

    key = jax.random.PRNGKey(0)
    kx, kp = jax.random.split(key)
    x = jax.random.normal(kx, in_shape, jnp.float32)
    params = init_fcc_standard_params(kp, in_size, h_size, out_size,
                                      n_hidden, sigma_w, sigma_b)

    ref = fcc_standard_forward_ref(x, params, act_name)

    # f32 weights: strict check against the pure-JAX reference.
    prepped_f32, dims_f32 = prepare_fused_params(params, jnp.float32)
    out_f32 = jax.block_until_ready(
        fcc_standard_forward(x, prepped_f32, dims_f32, act_name))
    assert out_f32.shape == (in_shape[0], out_size), out_f32.shape
    assert jnp.allclose(out_f32, ref, atol=1e-4, rtol=1e-4), (
        float(jnp.max(jnp.abs(out_f32 - ref))))

    # bf16 weights (MXU-native on v6e/v7x): looser tolerance vs f32 reference.
    prepped_bf16, dims_bf16 = prepare_fused_params(params, jnp.bfloat16)
    out_bf16 = jax.block_until_ready(
        fcc_standard_forward(x, prepped_bf16, dims_bf16, act_name))
    assert out_bf16.shape == (in_shape[0], out_size), out_bf16.shape
    assert jnp.allclose(out_bf16, ref, atol=1e-1, rtol=5e-2), (
        float(jnp.max(jnp.abs(out_bf16 - ref))))

    print("KERNEL_OK")
</pallas_src>

<mosaic_0001>
module attributes {stable_mosaic.version = 11 : i64} {
  func.func @_fcc_fused_kernel(%arg0: i32, %arg1: memref<8x128xf32, #tpu.memory_space<vmem>>, %arg2: memref<128x128xf32, #tpu.memory_space<vmem>>, %arg3: memref<1x128xf32, #tpu.memory_space<vmem>>, %arg4: memref<128x128xf32, #tpu.memory_space<vmem>>, %arg5: memref<1x128xf32, #tpu.memory_space<vmem>>, %arg6: memref<128x128xf32, #tpu.memory_space<vmem>>, %arg7: memref<1x128xf32, #tpu.memory_space<vmem>>, %arg8: memref<128x128xf32, #tpu.memory_space<vmem>>, %arg9: memref<1x128xf32, #tpu.memory_space<vmem>>, %arg10: memref<8x128xf32, #tpu.memory_space<vmem>>) attributes {dimension_semantics = [#tpu.dimension_semantics<parallel>], iteration_bounds = array<i64: 1>, scalar_prefetch = 0 : i64, scratch_operands = 0 : i64, tpu.core_type = #tpu.core_type<tc>, window_params = [{transform_indices = @transform_0, window_bounds = array<i64: 8, 128>}, {pipeline_mode = #tpu.pipeline_mode<synchronous>, transform_indices = @transform_1, window_bounds = array<i64: 128, 128>}, {pipeline_mode = #tpu.pipeline_mode<synchronous>, transform_indices = @transform_2, window_bounds = array<i64: 1, 128>}, {pipeline_mode = #tpu.pipeline_mode<synchronous>, transform_indices = @transform_3, window_bounds = array<i64: 128, 128>}, {pipeline_mode = #tpu.pipeline_mode<synchronous>, transform_indices = @transform_4, window_bounds = array<i64: 1, 128>}, {pipeline_mode = #tpu.pipeline_mode<synchronous>, transform_indices = @transform_5, window_bounds = array<i64: 128, 128>}, {pipeline_mode = #tpu.pipeline_mode<synchronous>, transform_indices = @transform_6, window_bounds = array<i64: 1, 128>}, {pipeline_mode = #tpu.pipeline_mode<synchronous>, transform_indices = @transform_7, window_bounds = array<i64: 128, 128>}, {pipeline_mode = #tpu.pipeline_mode<synchronous>, transform_indices = @transform_8, window_bounds = array<i64: 1, 128>}, {transform_indices = @transform_9, window_bounds = array<i64: 8, 128>}]} {
    %c0 = arith.constant 0 : index
    %c0_0 = arith.constant 0 : index
    %0 = vector.load %arg1[%c0, %c0_0] : memref<8x128xf32, #tpu.memory_space<vmem>>, vector<8x128xf32>
    %c0_1 = arith.constant 0 : index
    %c0_2 = arith.constant 0 : index
    %1 = vector.load %arg2[%c0_1, %c0_2] : memref<128x128xf32, #tpu.memory_space<vmem>>, vector<128x128xf32>
    %cst = arith.constant dense<0.000000e+00> : vector<8x128xf32>
    %2 = tpu.matmul %0, %1, %cst {dimension_numbers = #tpu.dot_dimension_numbers<[1], [0], [0], [1], [0, 0, 1, 1], [], []>} : vector<8x128xf32>, vector<128x128xf32>, vector<8x128xf32> -> vector<8x128xf32>
    %c0_3 = arith.constant 0 : index
    %c0_4 = arith.constant 0 : index
    %3 = vector.load %arg3[%c0_3, %c0_4] : memref<1x128xf32, #tpu.memory_space<vmem>>, vector<1x128xf32>
    %4 = vector.broadcast %3 : vector<1x128xf32> to vector<8x128xf32>
    %5 = arith.addf %2, %4 : vector<8x128xf32>
    %6 = math.erf %5 : vector<8x128xf32>
    %c0_5 = arith.constant 0 : index
    %c0_6 = arith.constant 0 : index
    %7 = vector.load %arg4[%c0_5, %c0_6] : memref<128x128xf32, #tpu.memory_space<vmem>>, vector<128x128xf32>
    %cst_7 = arith.constant dense<0.000000e+00> : vector<8x128xf32>
    %8 = tpu.matmul %6, %7, %cst_7 {dimension_numbers = #tpu.dot_dimension_numbers<[1], [0], [0], [1], [0, 0, 1, 1], [], []>} : vector<8x128xf32>, vector<128x128xf32>, vector<8x128xf32> -> vector<8x128xf32>
    %c0_8 = arith.constant 0 : index
    %c0_9 = arith.constant 0 : index
    %9 = vector.load %arg5[%c0_8, %c0_9] : memref<1x128xf32, #tpu.memory_space<vmem>>, vector<1x128xf32>
    %10 = vector.broadcast %9 : vector<1x128xf32> to vector<8x128xf32>
    %11 = arith.addf %8, %10 : vector<8x128xf32>
    %12 = math.erf %11 : vector<8x128xf32>
    %c0_10 = arith.constant 0 : index
    %c0_11 = arith.constant 0 : index
    %13 = vector.load %arg6[%c0_10, %c0_11] : memref<128x128xf32, #tpu.memory_space<vmem>>, vector<128x128xf32>
    %cst_12 = arith.constant dense<0.000000e+00> : vector<8x128xf32>
    %14 = tpu.matmul %12, %13, %cst_12 {dimension_numbers = #tpu.dot_dimension_numbers<[1], [0], [0], [1], [0, 0, 1, 1], [], []>} : vector<8x128xf32>, vector<128x128xf32>, vector<8x128xf32> -> vector<8x128xf32>
    %c0_13 = arith.constant 0 : index
    %c0_14 = arith.constant 0 : index
    %15 = vector.load %arg7[%c0_13, %c0_14] : memref<1x128xf32, #tpu.memory_space<vmem>>, vector<1x128xf32>
    %16 = vector.broadcast %15 : vector<1x128xf32> to vector<8x128xf32>
    %17 = arith.addf %14, %16 : vector<8x128xf32>
    %18 = math.erf %17 : vector<8x128xf32>
    %c0_15 = arith.constant 0 : index
    %c0_16 = arith.constant 0 : index
    %19 = vector.load %arg8[%c0_15, %c0_16] : memref<128x128xf32, #tpu.memory_space<vmem>>, vector<128x128xf32>
    %cst_17 = arith.constant dense<0.000000e+00> : vector<8x128xf32>
    %20 = tpu.matmul %18, %19, %cst_17 {dimension_numbers = #tpu.dot_dimension_numbers<[1], [0], [0], [1], [0, 0, 1, 1], [], []>} : vector<8x128xf32>, vector<128x128xf32>, vector<8x128xf32> -> vector<8x128xf32>
    %c0_18 = arith.constant 0 : index
    %c0_19 = arith.constant 0 : index
    %21 = vector.load %arg9[%c0_18, %c0_19] : memref<1x128xf32, #tpu.memory_space<vmem>>, vector<1x128xf32>
    %22 = vector.broadcast %21 : vector<1x128xf32> to vector<8x128xf32>
    %23 = arith.addf %20, %22 : vector<8x128xf32>
    %c0_20 = arith.constant 0 : index
    %c0_21 = arith.constant 0 : index
    %24 = vector.load %arg10[%c0_20, %c0_21] : memref<8x128xf32, #tpu.memory_space<vmem>>, vector<8x128xf32>
    tpu.vector_store %arg10[%c0_20, %c0_21], %23 {strides = array<i32>} : memref<8x128xf32, #tpu.memory_space<vmem>>, vector<8x128xf32>,
    return
  }
  func.func @transform_0(%arg0: i32) -> (i32, i32) {
    %c0_i32 = arith.constant 0 : i32
    %c0_i32_0 = arith.constant 0 : i32
    return %arg0, %c0_i32 : i32, i32
  }
  func.func @transform_1(%arg0: i32) -> (i32, i32) {
    %c0_i32 = arith.constant 0 : i32
    %c0_i32_0 = arith.constant 0 : i32
    %c0_i32_1 = arith.constant 0 : i32
    return %c0_i32, %c0_i32_0 : i32, i32
  }
  func.func @transform_2(%arg0: i32) -> (i32, i32) {
    %c0_i32 = arith.constant 0 : i32
    %c0_i32_0 = arith.constant 0 : i32
    %c0_i32_1 = arith.constant 0 : i32
    return %c0_i32, %c0_i32_0 : i32, i32
  }
  func.func @transform_3(%arg0: i32) -> (i32, i32) {
    %c0_i32 = arith.constant 0 : i32
    %c0_i32_0 = arith.constant 0 : i32
    %c0_i32_1 = arith.constant 0 : i32
    return %c0_i32, %c0_i32_0 : i32, i32
  }
  func.func @transform_4(%arg0: i32) -> (i32, i32) {
    %c0_i32 = arith.constant 0 : i32
    %c0_i32_0 = arith.constant 0 : i32
    %c0_i32_1 = arith.constant 0 : i32
    return %c0_i32, %c0_i32_0 : i32, i32
  }
  func.func @transform_5(%arg0: i32) -> (i32, i32) {
    %c0_i32 = arith.constant 0 : i32
    %c0_i32_0 = arith.constant 0 : i32
    %c0_i32_1 = arith.constant 0 : i32
    return %c0_i32, %c0_i32_0 : i32, i32
  }
  func.func @transform_6(%arg0: i32) -> (i32, i32) {
    %c0_i32 = arith.constant 0 : i32
    %c0_i32_0 = arith.constant 0 : i32
    %c0_i32_1 = arith.constant 0 : i32
    return %c0_i32, %c0_i32_0 : i32, i32
  }
  func.func @transform_7(%arg0: i32) -> (i32, i32) {
    %c0_i32 = arith.constant 0 : i32
    %c0_i32_0 = arith.constant 0 : i32
    %c0_i32_1 = arith.constant 0 : i32
    return %c0_i32, %c0_i32_0 : i32, i32
  }
  func.func @transform_8(%arg0: i32) -> (i32, i32) {
    %c0_i32 = arith.constant 0 : i32
    %c0_i32_0 = arith.constant 0 : i32
    %c0_i32_1 = arith.constant 0 : i32
    return %c0_i32, %c0_i32_0 : i32, i32
  }
  func.func @transform_9(%arg0: i32) -> (i32, i32) {
    %c0_i32 = arith.constant 0 : i32
    %c0_i32_0 = arith.constant 0 : i32
    return %arg0, %c0_i32 : i32, i32
  }
}

</mosaic_0001>

<llo_original>
// kernel: tpu_custom_call.1
$region0: #{tpu_custom_call.1}
  #allocation0 [shape = 'u32[]', space=smem, size = 0x4, offset = 0x4, fixed_abs, tag = 'smem constant byte address 0x4 - core index']
  #allocation1 [shape = 'u32[72,128]{1,0:T(1,128)}', space=vmem, size = 0x9000, scoped, tag = 'internal scratch']
  %s0 = inlined_call_operand.hbm [shape: f32[8,128], index: 0, kind: input, shape index: {}]
  %s1 = inlined_call_operand.hbm [shape: f32[128,128], index: 1, kind: input, shape index: {}]
  %s2 = inlined_call_operand.vmem [shape: f32[1,128], index: 2, kind: input, shape index: {}]
  %s3 = inlined_call_operand.hbm [shape: f32[128,128], index: 3, kind: input, shape index: {}]
  %s4 = inlined_call_operand.vmem [shape: f32[1,128], index: 4, kind: input, shape index: {}]
  %s5 = inlined_call_operand.hbm [shape: f32[128,128], index: 5, kind: input, shape index: {}]
  %s6 = inlined_call_operand.vmem [shape: f32[1,128], index: 6, kind: input, shape index: {}]
  %s7 = inlined_call_operand.hbm [shape: f32[128,128], index: 7, kind: input, shape index: {}]
  %s8 = inlined_call_operand.vmem [shape: f32[1,128], index: 8, kind: input, shape index: {}]
  %s9 = inlined_call_operand.hbm [shape: f32[8,128], index: 9, kind: output, shape index: {}]
  %s10 = sld [smem:[#allocation0]]
  $region66: #{tpu_custom_call.1} parent=0
    _
  %s12 = ssub.s32 1, %s10
  %s13 = scalar_select 0, %s12, %s10
  $region1: #{tpu_custom_call.1} parent=0
    #allocation2 [shape = 'u8[4096]{0}', space=vmem, size = 0x1000, scoped, tag = 'input window, operand 0, single buffered']
    #allocation3 [shape = 's32[1]{0}', space=sflag, size = 0x4, scoped, tag = 'scoped memory for tpu_custom_call.1']
    #allocation4 [shape = 's32[1]{0}', space=sflag, size = 0x4, scoped, tag = 'scoped memory for tpu_custom_call.1']
    #allocation5 [shape = 'u8[65536]{0}', space=vmem, size = 0x10000, scoped, tag = 'input window, operand 1, single buffered']
    #allocation6 [shape = 's32[1]{0}', space=sflag, size = 0x4, scoped, tag = 'scoped memory for tpu_custom_call.1']
    #allocation7 [shape = 'u8[65536]{0}', space=vmem, size = 0x10000, scoped, tag = 'input window, operand 3, single buffered']
    #allocation8 [shape = 'u8[65536]{0}', space=vmem, size = 0x10000, scoped, tag = 'input window, operand 5, single buffered']
    #allocation9 [shape = 's32[1]{0}', space=sflag, size = 0x4, scoped, tag = 'scoped memory for tpu_custom_call.1']
    #allocation10 [shape = 'u8[65536]{0}', space=vmem, size = 0x10000, scoped, tag = 'input window, operand 7, single buffered']
    #allocation11 [shape = 'u8[4096]{0}', space=vmem, size = 0x1000, scoped, tag = 'output window, operand 0, single buffered']
    %14 = vsyncpa [#allocation3], 0
    %15 = vsyncpa [#allocation6], 0
    %16 = vsyncpa [#allocation9], 0
    %17 = vsyncpa [#allocation4], 0
    // Predicated region
    $region2: #{tpu_custom_call.1} parent=1 // pred_check
      _
    $region3: #{tpu_custom_call.1} parent=1 // pred_check_branch
      %19 = sbr.rel (0) target = $region5
    $region4: #{tpu_custom_call.1} parent=1 // pred_region
      %21 = vsyncadd [#allocation3], 0
      %s23 = sshll.u32 %s0, 4
      %s24 = int_to_ptr.hbm [resolvable:$true] %s23
      %s25 = sshll.u32 [#allocation2], 4
      %s26 = int_to_ptr.vmem [resolvable:$true] %s25
      %28 = dma.hbm_to_vmem [thread:$0]  %s24, 128, %s26, [#allocation3]
    $region5: #{tpu_custom_call.1} parent=1 // pred_fallthru
      _
    // Predicated region
    $region6: #{tpu_custom_call.1} parent=1 // pred_check
      _
    $region7: #{tpu_custom_call.1} parent=1 // pred_check_branch
      %30 = sbr.rel (0) target = $region9
    $region8: #{tpu_custom_call.1} parent=1 // pred_region
      %32 = vsyncadd [#allocation6], 0
      %s33 = sshll.u32 %s1, 4
      %s34 = int_to_ptr.hbm [resolvable:$true] %s33
      %s35 = sshll.u32 [#allocation5], 4
      %s36 = int_to_ptr.vmem [resolvable:$true] %s35
      %41 = dma.hbm_to_vmem [thread:$0]  %s34, 2048, %s36, [#allocation6], 128, 128, 8
    $region9: #{tpu_custom_call.1} parent=1 // pred_fallthru
      _
    // Predicated region
    $region10: #{tpu_custom_call.1} parent=1 // pred_check
      _
    $region11: #{tpu_custom_call.1} parent=1 // pred_check_branch
      %43 = sbr.rel (0) target = $region13
    $region12: #{tpu_custom_call.1} parent=1 // pred_region
      _
    $region13: #{tpu_custom_call.1} parent=1 // pred_fallthru
      _
    // Predicated region
    $region14: #{tpu_custom_call.1} parent=1 // pred_check
      _
    $region15: #{tpu_custom_call.1} parent=1 // pred_check_branch
      %45 = sbr.rel (0) target = $region17
    $region16: #{tpu_custom_call.1} parent=1 // pred_region
      %47 = vsyncadd [#allocation6], 0
      %s48 = sshll.u32 %s3, 4
      %s49 = int_to_ptr.hbm [resolvable:$true] %s48
      %s50 = sshll.u32 [#allocation7], 4
      %s51 = int_to_ptr.vmem [resolvable:$true] %s50
      %56 = dma.hbm_to_vmem [thread:$0]  %s49, 2048, %s51, [#allocation6], 128, 128, 8
    $region17: #{tpu_custom_call.1} parent=1 // pred_fallthru
      _
    // Predicated region
    $region18: #{tpu_custom_call.1} parent=1 // pred_check
      _
    $region19: #{tpu_custom_call.1} parent=1 // pred_check_branch
      %58 = sbr.rel (0) target = $region21
    $region20: #{tpu_custom_call.1} parent=1 // pred_region
      _
    $region21: #{tpu_custom_call.1} parent=1 // pred_fallthru
      _
    // Predicated region
    $region22: #{tpu_custom_call.1} parent=1 // pred_check
      _
    $region23: #{tpu_custom_call.1} parent=1 // pred_check_branch
      %60 = sbr.rel (0) target = $region25
    $region24: #{tpu_custom_call.1} parent=1 // pred_region
      %62 = vsyncadd [#allocation9], 0
      %s63 = sshll.u32 %s5, 4
      %s64 = int_to_ptr.hbm [resolvable:$true] %s63
      %s65 = sshll.u32 [#allocation8], 4
      %s66 = int_to_ptr.vmem [resolvable:$true] %s65
      %71 = dma.hbm_to_vmem [thread:$0]  %s64, 2048, %s66, [#allocation9], 128, 128, 8
    $region25: #{tpu_custom_call.1} parent=1 // pred_fallthru
      _
    // Predicated region
    $region26: #{tpu_custom_call.1} parent=1 // pred_check
      _
    $region27: #{tpu_custom_call.1} parent=1 // pred_check_branch
      %73 = sbr.rel (0) target = $region29
    $region28: #{tpu_custom_call.1} parent=1 // pred_region
      _
    $region29: #{tpu_custom_call.1} parent=1 // pred_fallthru
      _
    // Predicated region
    $region30: #{tpu_custom_call.1} parent=1 // pred_check
      _
    $region31: #{tpu_custom_call.1} parent=1 // pred_check_branch
      %75 = sbr.rel (0) target = $region33
    $region32: #{tpu_custom_call.1} parent=1 // pred_region
      %77 = vsyncadd [#allocation9], 0
      %s78 = sshll.u32 %s7, 4
      %s79 = int_to_ptr.hbm [resolvable:$true] %s78
      %s80 = sshll.u32 [#allocation10], 4
      %s81 = int_to_ptr.vmem [resolvable:$true] %s80
      %86 = dma.hbm_to_vmem [thread:$0]  %s79, 2048, %s81, [#allocation9], 128, 128, 8
    $region33: #{tpu_custom_call.1} parent=1 // pred_fallthru
      _
    // Predicated region
    $region34: #{tpu_custom_call.1} parent=1 // pred_check
      _
    $region35: #{tpu_custom_call.1} parent=1 // pred_check_branch
      %88 = sbr.rel (0) target = $region37
    $region36: #{tpu_custom_call.1} parent=1 // pred_region
      _
    $region37: #{tpu_custom_call.1} parent=1 // pred_fallthru
      _
    // Predicated region
    $region38: #{tpu_custom_call.1} parent=1 // pred_check
      _
    $region39: #{tpu_custom_call.1} parent=1 // pred_check_branch
      %90 = sbr.rel (0) target = $region41
    $region40: #{tpu_custom_call.1} parent=1 // pred_region
      %92 = dma.done [#allocation3], 128
    $region41: #{tpu_custom_call.1} parent=1 // pred_fallthru
      _
    // Predicated region
    $region42: #{tpu_custom_call.1} parent=1 // pred_check
      _
    $region43: #{tpu_custom_call.1} parent=1 // pred_check_branch
      %94 = sbr.rel (0) target = $region45
    $region44: #{tpu_custom_call.1} parent=1 // pred_region
      %96 = dma.done [#allocation6], 2048
    $region45: #{tpu_custom_call.1} parent=1 // pred_fallthru
      _
    // Predicated region
    $region46: #{tpu_custom_call.1} parent=1 // pred_check
      _
    $region47: #{tpu_custom_call.1} parent=1 // pred_check_branch
      %98 = sbr.rel (0) target = $region49
    $region48: #{tpu_custom_call.1} parent=1 // pred_region
      %100 = dma.done [#allocation6], 2048
    $region49: #{tpu_custom_call.1} parent=1 // pred_fallthru
      _
    // Predicated region
    $region50: #{tpu_custom_call.1} parent=1 // pred_check
      _
    $region51: #{tpu_custom_call.1} parent=1 // pred_check_branch
      %102 = sbr.rel (0) target = $region53
    $region52: #{tpu_custom_call.1} parent=1 // pred_region
      %104 = dma.done [#allocation9], 2048
    $region53: #{tpu_custom_call.1} parent=1 // pred_fallthru
      _
    // Predicated region
    $region54: #{tpu_custom_call.1} parent=1 // pred_check
      _
    $region55: #{tpu_custom_call.1} parent=1 // pred_check_branch
      %106 = sbr.rel (0) target = $region57
    $region56: #{tpu_custom_call.1} parent=1 // pred_region
      %108 = dma.done [#allocation9], 2048
    $region57: #{tpu_custom_call.1} parent=1 // pred_fallthru
      _
    %v109 = vld [vmem:[#allocation2] sm:$0xff]
    %v110 = vld [vmem:[#allocation5] sm:$0xff]
    %v111 = vld [vmem:[#allocation5 + $0x8] sm:$0xff]
    %v112 = vld [vmem:[#allocation5 + $0x10] sm:$0xff]
    %v113 = vld [vmem:[#allocation5 + $0x18] sm:$0xff]
    %v114 = vld [vmem:[#allocation5 + $0x20] sm:$0xff]
    %v115 = vld [vmem:[#allocation5 + $0x28] sm:$0xff]
    %v116 = vld [vmem:[#allocation5 + $0x30] sm:$0xff]
    %v117 = vld [vmem:[#allocation5 + $0x38] sm:$0xff]
    %v118 = vld [vmem:[#allocation5 + $0x40] sm:$0xff]
    %v119 = vld [vmem:[#allocation5 + $0x48] sm:$0xff]
    %v120 = vld [vmem:[#allocation5 + $0x50] sm:$0xff]
    %v121 = vld [vmem:[#allocation5 + $0x58] sm:$0xff]
    %v122 = vld [vmem:[#allocation5 + $0x60] sm:$0xff]
    %v123 = vld [vmem:[#allocation5 + $0x68] sm:$0xff]
    %v124 = vld [vmem:[#allocation5 + $0x70] sm:$0xff]
    %v125 = vld [vmem:[#allocation5 + $0x78] sm:$0xff]
    %v126 = vld [vmem:[%s2] sm:$0x1]
    %v128 = vperm.slane %v126, 0
    %130 = vmatpush.msra.mxu0 %v125
    %131 = vmatpush.msra.mxu0 %v124
    %132 = vmatpush.msra.mxu0 %v123
    %133 = vmatpush.msra.mxu0 %v122
    %134 = vmatpush.msra.mxu0 %v121
    %135 = vmatpush.msra.mxu0 %v120
    %136 = vmatpush.msra.mxu0 %v119
    %137 = vmatpush.msra.mxu0 %v118
    %138 = vmatpush.msra.mxu0 %v117
    %139 = vmatpush.msra.mxu0 %v116
    %140 = vmatpush.msra.mxu0 %v115
    %141 = vmatpush.msra.mxu0 %v114
    %142 = vmatpush.msra.mxu0 %v113
    %143 = vmatpush.msra.mxu0 %v112
    %144 = vmatpush.msra.mxu0 %v111
    %145 = vmatpush.msra.mxu0 %v110
    %146 = vmatmul.f32.gmra.mxu0 %v109
    %v147 = vpop.f32.mrf.mxu0
    %v148 = vadd.f32 %v128, %v147
    %149 = vdwg.mxu0
    %v150 = vmul.f32 %v148, %v148
    %v151 = vmin.f32 16.0, %v150
    %v152 = vmul.f32 %v151, 2.1237322e-06
    %v153 = vadd.f32 %v152, 0.00028619796
    %v154 = vmul.f32 %v151, %v153
    %v155 = vadd.f32 %v154, 0.0036580483
    %v156 = vmul.f32 %v151, %v155
    %v157 = vadd.f32 %v156, 0.05243302
    %v158 = vmul.f32 %v151, %v157
    %v159 = vadd.f32 %v158, 0.18741608
    %v160 = vmul.f32 %v151, %v159
    %v161 = vadd.f32 %v160, 1.1283791
    %v162 = vmul.f32 %v148, %v161
    %v163 = vmul.f32 %v151, 3.8918573e-05
    %v164 = vadd.f32 %v163, 0.001143296
    %v165 = vmul.f32 %v151, %v164
    %v166 = vadd.f32 %v165, 0.014752088
    %v167 = vmul.f32 %v151, %v166
    %v168 = vadd.f32 %v167, 0.112945676
    %v169 = vmul.f32 %v151, %v168
    %v170 = vadd.f32 %v169, 0.4994258
    %v171 = vmul.f32 %v151, %v170
    %v172 = vadd.f32 %v171, 1.0
    %v173 = vrcp.pop %v172
    %v174 = vmul.f32 %v172, %v173
    %v175 = vsub.f32 1.0, %v174
    %v176 = vmul.f32 %v173, %v175
    %v177 = vadd.f32 %v173, %v176
    %vm178 = vweird.f32 %v172
    %vm179 = vweird.f32 %v173
    %vm180 = vmor %vm178, %vm179
    %v181 = vsel %vm180, %v173, %v177
    %v182 = vand.u32 2147483647, %v172
    %vm183 = vcmp.eq.f32.partialorder %v182, 8.507059e+37
    %v184 = vand.u32 %v172, 2147483648
    %v185 = vor.u32 1.1754944e-38, %v184
    %v186 = vsel %vm183, %v185, %v181
    %v187 = vmul.f32 %v162, %v186
    %v188 = vmin.f32 %v187, 1.0
    %v189 = vmax.f32 %v188, -1.0
    %v190 = vld [vmem:[#allocation7] sm:$0xff]
    %v191 = vld [vmem:[#allocation7 + $0x8] sm:$0xff]
    %v192 = vld [vmem:[#allocation7 + $0x10] sm:$0xff]
    %v193 = vld [vmem:[#allocation7 + $0x18] sm:$0xff]
    %v194 = vld [vmem:[#allocation7 + $0x20] sm:$0xff]
    %v195 = vld [vmem:[#allocation7 + $0x28] sm:$0xff]
    %v196 = vld [vmem:[#allocation7 + $0x30] sm:$0xff]
    %v197 = vld [vmem:[#allocation7 + $0x38] sm:$0xff]
    %v198 = vld [vmem:[#allocation7 + $0x40] sm:$0xff]
    %v199 = vld [vmem:[#allocation7 + $0x48] sm:$0xff]
    %v200 = vld [vmem:[#allocation7 + $0x50] sm:$0xff]
    %v201 = vld [vmem:[#allocation7 + $0x58] sm:$0xff]
    %v202 = vld [vmem:[#allocation7 + $0x60] sm:$0xff]
    %v203 = vld [vmem:[#allocation7 + $0x68] sm:$0xff]
    %v204 = vld [vmem:[#allocation7 + $0x70] sm:$0xff]
    %v205 = vld [vmem:[#allocation7 + $0x78] sm:$0xff]
    %v206 = vld [vmem:[%s4] sm:$0x1]
    %v208 = vperm.slane %v206, 0
    %210 = vmatpush.msra.mxu0 %v205
    %211 = vmatpush.msra.mxu0 %v204
    %212 = vmatpush.msra.mxu0 %v203
    %213 = vmatpush.msra.mxu0 %v202
    %214 = vmatpush.msra.mxu0 %v201
    %215 = vmatpush.msra.mxu0 %v200
    %216 = vmatpush.msra.mxu0 %v199
    %217 = vmatpush.msra.mxu0 %v198
    %218 = vmatpush.msra.mxu0 %v197
    %219 = vmatpush.msra.mxu0 %v196
    %220 = vmatpush.msra.mxu0 %v195
    %221 = vmatpush.msra.mxu0 %v194
    %222 = vmatpush.msra.mxu0 %v193
    %223 = vmatpush.msra.mxu0 %v192
    %224 = vmatpush.msra.mxu0 %v191
    %225 = vmatpush.msra.mxu0 %v190
    %226 = vmatmul.f32.gmra.mxu0 %v189
    %v227 = vpop.f32.mrf.mxu0
    %v228 = vadd.f32 %v208, %v227
    %229 = vdwg.mxu0
    %v230 = vmul.f32 %v228, %v228
    %v231 = vmin.f32 16.0, %v230
    %v232 = vmul.f32 %v231, 2.1237322e-06
    %v233 = vadd.f32 %v232, 0.00028619796
    %v234 = vmul.f32 %v231, %v233
    %v235 = vadd.f32 %v234, 0.0036580483
    %v236 = vmul.f32 %v231, %v235
    %v237 = vadd.f32 %v236, 0.05243302
    %v238 = vmul.f32 %v231, %v237
    %v239 = vadd.f32 %v238, 0.18741608
    %v240 = vmul.f32 %v231, %v239
    %v241 = vadd.f32 %v240, 1.1283791
    %v242 = vmul.f32 %v228, %v241
    %v243 = vmul.f32 %v231, 3.8918573e-05
    %v244 = vadd.f32 %v243, 0.001143296
    %v245 = vmul.f32 %v231, %v244
    %v246 = vadd.f32 %v245, 0.014752088
    %v247 = vmul.f32 %v231, %v246
    %v248 = vadd.f32 %v247, 0.112945676
    %v249 = vmul.f32 %v231, %v248
    %v250 = vadd.f32 %v249, 0.4994258
    %v251 = vmul.f32 %v231, %v250
    %v252 = vadd.f32 %v251, 1.0
    %v253 = vrcp.pop %v252
    %v254 = vmul.f32 %v252, %v253
    %v255 = vsub.f32 1.0, %v254
    %v256 = vmul.f32 %v253, %v255
    %v257 = vadd.f32 %v253, %v256
    %vm258 = vweird.f32 %v252
    %vm259 = vweird.f32 %v253
    %vm260 = vmor %vm258, %vm259
    %v261 = vsel %vm260, %v253, %v257
    %v262 = vand.u32 2147483647, %v252
    %vm263 = vcmp.eq.f32.partialorder %v262, 8.507059e+37
    %v264 = vand.u32 %v252, 2147483648
    %v265 = vor.u32 1.1754944e-38, %v264
    %v266 = vsel %vm263, %v265, %v261
    %v267 = vmul.f32 %v242, %v266
    %v268 = vmin.f32 %v267, 1.0
    %v269 = vmax.f32 %v268, -1.0
    %v270 = vld [vmem:[#allocation8] sm:$0xff]
    %v271 = vld [vmem:[#allocation8 + $0x8] sm:$0xff]
    %v272 = vld [vmem:[#allocation8 + $0x10] sm:$0xff]
    %v273 = vld [vmem:[#allocation8 + $0x18] sm:$0xff]
    %v274 = vld [vmem:[#allocation8 + $0x20] sm:$0xff]
    %v275 = vld [vmem:[#allocation8 + $0x28] sm:$0xff]
    %v276 = vld [vmem:[#allocation8 + $0x30] sm:$0xff]
    %v277 = vld [vmem:[#allocation8 + $0x38] sm:$0xff]
    %v278 = vld [vmem:[#allocation8 + $0x40] sm:$0xff]
    %v279 = vld [vmem:[#allocation8 + $0x48] sm:$0xff]
    %v280 = vld [vmem:[#allocation8 + $0x50] sm:$0xff]
    %v281 = vld [vmem:[#allocation8 + $0x58] sm:$0xff]
    %v282 = vld [vmem:[#allocation8 + $0x60] sm:$0xff]
    %v283 = vld [vmem:[#allocation8 + $0x68] sm:$0xff]
    %v284 = vld [vmem:[#allocation8 + $0x70] sm:$0xff]
    %v285 = vld [vmem:[#allocation8 + $0x78] sm:$0xff]
    %v286 = vld [vmem:[%s6] sm:$0x1]
    %v288 = vperm.slane %v286, 0
    %290 = vmatpush.msra.mxu0 %v285
    %291 = vmatpush.msra.mxu0 %v284
    %292 = vmatpush.msra.mxu0 %v283
    %293 = vmatpush.msra.mxu0 %v282
    %294 = vmatpush.msra.mxu0 %v281
    %295 = vmatpush.msra.mxu0 %v280
    %296 = vmatpush.msra.mxu0 %v279
    %297 = vmatpush.msra.mxu0 %v278
    %298 = vmatpush.msra.mxu0 %v277
    %299 = vmatpush.msra.mxu0 %v276
    %300 = vmatpush.msra.mxu0 %v275
    %301 = vmatpush.msra.mxu0 %v274
    %302 = vmatpush.msra.mxu0 %v273
    %303 = vmatpush.msra.mxu0 %v272
    %304 = vmatpush.msra.mxu0 %v271
    %305 = vmatpush.msra.mxu0 %v270
    %306 = vmatmul.f32.gmra.mxu0 %v269
    %v307 = vpop.f32.mrf.mxu0
    %v308 = vadd.f32 %v288, %v307
    %309 = vdwg.mxu0
    %v310 = vmul.f32 %v308, %v308
    %v311 = vmin.f32 16.0, %v310
    %v312 = vmul.f32 %v311, 2.1237322e-06
    %v313 = vadd.f32 %v312, 0.00028619796
    %v314 = vmul.f32 %v311, %v313
    %v315 = vadd.f32 %v314, 0.0036580483
    %v316 = vmul.f32 %v311, %v315
    %v317 = vadd.f32 %v316, 0.05243302
    %v318 = vmul.f32 %v311, %v317
    %v319 = vadd.f32 %v318, 0.18741608
    %v320 = vmul.f32 %v311, %v319
    %v321 = vadd.f32 %v320, 1.1283791
    %v322 = vmul.f32 %v308, %v321
    %v323 = vmul.f32 %v311, 3.8918573e-05
    %v324 = vadd.f32 %v323, 0.001143296
    %v325 = vmul.f32 %v311, %v324
    %v326 = vadd.f32 %v325, 0.014752088
    %v327 = vmul.f32 %v311, %v326
    %v328 = vadd.f32 %v327, 0.112945676
    %v329 = vmul.f32 %v311, %v328
    %v330 = vadd.f32 %v329, 0.4994258
    %v331 = vmul.f32 %v311, %v330
    %v332 = vadd.f32 %v331, 1.0
    %v333 = vrcp.pop %v332
    %v334 = vmul.f32 %v332, %v333
    %v335 = vsub.f32 1.0, %v334
    %v336 = vmul.f32 %v333, %v335
    %v337 = vadd.f32 %v333, %v336
    %vm338 = vweird.f32 %v332
    %vm339 = vweird.f32 %v333
    %vm340 = vmor %vm338, %vm339
    %v341 = vsel %vm340, %v333, %v337
    %v342 = vand.u32 2147483647, %v332
    %vm343 = vcmp.eq.f32.partialorder %v342, 8.507059e+37
    %v344 = vand.u32 %v332, 2147483648
    %v345 = vor.u32 1.1754944e-38, %v344
    %v346 = vsel %vm343, %v345, %v341
    %v347 = vmul.f32 %v322, %v346
    %v348 = vmin.f32 %v347, 1.0
    %v349 = vmax.f32 %v348, -1.0
    %v350 = vld [vmem:[#allocation10] sm:$0xff]
    %v351 = vld [vmem:[#allocation10 + $0x8] sm:$0xff]
    %v352 = vld [vmem:[#allocation10 + $0x10] sm:$0xff]
    %v353 = vld [vmem:[#allocation10 + $0x18] sm:$0xff]
    %v354 = vld [vmem:[#allocation10 + $0x20] sm:$0xff]
    %v355 = vld [vmem:[#allocation10 + $0x28] sm:$0xff]
    %v356 = vld [vmem:[#allocation10 + $0x30] sm:$0xff]
    %v357 = vld [vmem:[#allocation10 + $0x38] sm:$0xff]
    %v358 = vld [vmem:[#allocation10 + $0x40] sm:$0xff]
    %v359 = vld [vmem:[#allocation10 + $0x48] sm:$0xff]
    %v360 = vld [vmem:[#allocation10 + $0x50] sm:$0xff]
    %v361 = vld [vmem:[#allocation10 + $0x58] sm:$0xff]
    %v362 = vld [vmem:[#allocation10 + $0x60] sm:$0xff]
    %v363 = vld [vmem:[#allocation10 + $0x68] sm:$0xff]
    %v364 = vld [vmem:[#allocation10 + $0x70] sm:$0xff]
    %v365 = vld [vmem:[#allocation10 + $0x78] sm:$0xff]
    %v366 = vld [vmem:[%s8] sm:$0x1]
    %v368 = vperm.slane %v366, 0
    %370 = vmatpush.msra.mxu0 %v365
    %371 = vmatpush.msra.mxu0 %v364
    %372 = vmatpush.msra.mxu0 %v363
    %373 = vmatpush.msra.mxu0 %v362
    %374 = vmatpush.msra.mxu0 %v361
    %375 = vmatpush.msra.mxu0 %v360
    %376 = vmatpush.msra.mxu0 %v359
    %377 = vmatpush.msra.mxu0 %v358
    %378 = vmatpush.msra.mxu0 %v357
    %379 = vmatpush.msra.mxu0 %v356
    %380 = vmatpush.msra.mxu0 %v355
    %381 = vmatpush.msra.mxu0 %v354
    %382 = vmatpush.msra.mxu0 %v353
    %383 = vmatpush.msra.mxu0 %v352
    %384 = vmatpush.msra.mxu0 %v351
    %385 = vmatpush.msra.mxu0 %v350
    %386 = vmatmul.f32.gmra.mxu0 %v349
    %v387 = vpop.f32.mrf.mxu0
    %v388 = vadd.f32 %v368, %v387
    %389 = vdwg.mxu0
    %390 = vst [vmem:[#allocation11] sm:$0xff] %v388
    // Predicated region
    $region58: #{tpu_custom_call.1} parent=1 // pred_check
      _
    $region59: #{tpu_custom_call.1} parent=1 // pred_check_branch
      %392 = sbr.rel (0) target = $region61
    $region60: #{tpu_custom_call.1} parent=1 // pred_region
      %394 = vsyncadd [#allocation4], 0
      %s396 = sshll.u32 [#allocation11], 4
      %s397 = int_to_ptr.vmem [resolvable:$true] %s396
      %s398 = sshll.u32 %s9, 4
      %s399 = int_to_ptr.hbm [resolvable:$true] %s398
      %401 = dma.vmem_to_hbm [thread:$0]  %s397, 128, %s399, [#allocation4]
    $region61: #{tpu_custom_call.1} parent=1 // pred_fallthru
      _
    // Predicated region
    $region62: #{tpu_custom_call.1} parent=1 // pred_check
      _
    $region63: #{tpu_custom_call.1} parent=1 // pred_check_branch
      %403 = sbr.rel (0) target = $region65
    $region64: #{tpu_custom_call.1} parent=1 // pred_region
      %405 = dma.done [#allocation4], 128
    $region65: #{tpu_custom_call.1} parent=1 // pred_fallthru
      _
    %406 = vsyncpa [#allocation3], 1
    %407 = vsyncpa [#allocation6], 1
    %408 = vsyncpa [#allocation9], 1
    %409 = vsyncpa [#allocation4], 1

</llo_original>
